<compile_context>
chip_gen: v6e
topology: v6e:2x2x1
jax: 0.10.0
libtpu: 0.0.40
codegen_flags: <defaults>
</compile_context>

<pallas_src>
import numpy as np
import jax
import jax.numpy as jnp
from jax.experimental import pallas as pl
from jax.experimental.pallas import tpu as pltpu

IMAGENET_MEAN = np.array([0.485, 0.456, 0.406], dtype=np.float32)
IMAGENET_STD = np.array([0.229, 0.224, 0.225], dtype=np.float32)


def _pil_bilinear_matrix(in_size: int, out_size: int) -> np.ndarray:
    """Row-stochastic (out_size, in_size) matrix reproducing PIL BILINEAR resize
    (triangle filter, antialiased when downscaling), as used by
    torchvision.transforms.Resize on PIL images."""
    scale = in_size / out_size
    filterscale = max(scale, 1.0)
    support = 1.0 * filterscale  # bilinear filter support
    mat = np.zeros((out_size, in_size), dtype=np.float64)
    for i in range(out_size):
        center = (i + 0.5) * scale
        lo = int(max(center - support + 0.5, 0))
        hi = int(min(center + support + 0.5, in_size))
        w = np.zeros(max(hi - lo, 1), dtype=np.float64)
        for j in range(lo, hi):
            x = (j + 0.5 - center) / filterscale
            w[j - lo] = max(0.0, 1.0 - abs(x))
        s = w.sum()
        if s > 0.0:
            w /= s
        mat[i, lo:hi] = w[: hi - lo]
    return mat.astype(np.float32)


def _make_kernel(col_first: bool, compute_dtype, cast_mode: str):
    """Per-(image, channel[, row-half]) resize+crop+normalize kernel.

    col_first=True contracts over W first (used for unsplit landscape images);
    cast_mode "direct" does a single uint8->compute_dtype convert, "safe" keeps
    the int32 hop in case the direct conversion does not lower on this jax/Mosaic.
    """

    def kernel(img_ref, rh_ref, rwt_ref, scale_ref, bias_ref, out_ref):
        # img_ref  : (1, 1, H, W) uint8         (one channel of one image)
        # rh_ref   : (crop_rows, H) compute_dtype (row-resize matrix, 1/255 folded)
        # rwt_ref  : (W, CROP) compute_dtype      (col-resize matrix, transposed)
        # scale_ref, bias_ref : (3,) f32 in SMEM  (1/std, -mean/std)
        # out_ref  : (1, 1, crop_rows, CROP) f32
        c = pl.program_id(1)  # channel grid axis
        u8 = img_ref[0, 0]    # (H, W) uint8 -- 1 B/px in HBM/VMEM
        if cast_mode == "direct":
            x = u8.astype(compute_dtype)                       # single convert
        else:
            x = u8.astype(jnp.int32).astype(jnp.float32).astype(compute_dtype)
        if col_first:
            t = jnp.dot(x, rwt_ref[...], preferred_element_type=jnp.float32)  # (H, CROP)
            t = t.astype(compute_dtype)
            y = jnp.dot(rh_ref[...], t, preferred_element_type=jnp.float32)   # (rows, CROP)
        else:
            t = jnp.dot(rh_ref[...], x, preferred_element_type=jnp.float32)   # (rows, W)
            t = t.astype(compute_dtype)
            y = jnp.dot(t, rwt_ref[...], preferred_element_type=jnp.float32)  # (rows, CROP)
        # Normalize as a per-channel FMA, kept in f32 (cheap; v5e has no bf16 VPU).
        out_ref[0, 0] = y * scale_ref[c] + bias_ref[c]

    return kernel


def _vmem_cap_bytes() -> int:
    """Generation-aware ceiling for the scoped VMEM limit (leave ~25% headroom)."""
    try:
        capacity = int(pltpu.get_tpu_info().vmem_capacity_bytes)
    except Exception:
        capacity = 64 * 1024 * 1024  # conservative (v7x-sized) fallback
    return (capacity * 3) // 4       # ~48 MiB on v7x, ~96 MiB on v5e/v6e


def _vmem_limit_bytes(H: int, W: int, crop_rows: int, crop: int, cbytes: int) -> int:
    est = (
        2 * H * W                                  # double-buffered uint8 channel block
        + H * W * (8 + cbytes)                     # in-kernel casted image copies (worst case)
        + 2 * crop_rows * H * cbytes               # rh blocks (double-buffered)
        + 2 * W * crop * cbytes                    # rwt blocks (double-buffered)
        + 2 * crop_rows * crop * 4                 # f32 output blocks (double-buffered)
        + max(crop_rows * W, H * crop) * (4 + cbytes)  # matmul intermediate (+ bf16 cast)
        + crop_rows * crop * 4                     # y before the FMA epilogue
    )
    # Raise the scoped default (16 MiB v5e / 32 MiB v6e/v7x) for large images, but
    # never approach the chip's physical VMEM (64 MiB v7x / 128 MiB v5e/v6e).
    return int(min(max(2 * est, 32 * 1024 * 1024), _vmem_cap_bytes()))


def _build_pipeline(N: int, H: int, W: int, crop: int, use_bf16: bool, cast_mode: str):
    compute_dtype = jnp.bfloat16 if use_bf16 else jnp.float32
    cbytes = jnp.dtype(compute_dtype).itemsize
    sub = 16 if use_bf16 else 8  # sublane tile of the compute dtype

    # Split each channel's output rows in two when both halves respect sublane
    # tiling: 2*3 even blocks balance v7x's 2 TensorCores (3 channels alone is a
    # 2:1 imbalance).  Row-first contraction so each half does half the MACs.
    split_rows = (crop % (2 * sub) == 0)

    if split_rows:
        crop_rows = crop // 2
        col_first = False
        grid = (N, 3, 2)
        img_spec = pl.BlockSpec((1, 1, H, W), lambda n, c, r: (n, c, 0, 0))
        rh_spec = pl.BlockSpec((crop_rows, H), lambda n, c, r: (r, 0))
        rwt_spec = pl.BlockSpec((W, crop), lambda n, c, r: (0, 0))
        out_spec = pl.BlockSpec((1, 1, crop_rows, crop), lambda n, c, r: (n, c, r, 0))
    else:
        crop_rows = crop
        col_first = W > H  # contract the longer spatial axis first
        grid = (N, 3)
        img_spec = pl.BlockSpec((1, 1, H, W), lambda n, c: (n, c, 0, 0))
        rh_spec = pl.BlockSpec((crop, H), lambda n, c: (0, 0))
        rwt_spec = pl.BlockSpec((W, crop), lambda n, c: (0, 0))
        out_spec = pl.BlockSpec((1, 1, crop, crop), lambda n, c: (n, c, 0, 0))

    kernel = _make_kernel(col_first, compute_dtype, cast_mode)

    call = pl.pallas_call(
        kernel,
        out_shape=jax.ShapeDtypeStruct((N, 3, crop, crop), jnp.float32),
        grid=grid,
        in_specs=[
            img_spec,
            rh_spec,
            rwt_spec,
            pl.BlockSpec(memory_space=pltpu.MemorySpace.SMEM),
            pl.BlockSpec(memory_space=pltpu.MemorySpace.SMEM),
        ],
        out_specs=out_spec,
        compiler_params=pltpu.CompilerParams(
            dimension_semantics=("parallel",) * len(grid),
            vmem_limit_bytes=_vmem_limit_bytes(H, W, crop_rows, crop, cbytes),
        ),
    )

    def pipeline(img_nhwc_u8, rh, rwt, scale, bias):
        # uint8 NHWC -> NCHW stays on device inside the same jit (one dispatch);
        # the image enters the kernel still at 1 byte/pixel.
        img_nchw = jnp.transpose(img_nhwc_u8, (0, 3, 1, 2))
        return call(img_nchw, rh, rwt, scale, bias)

    return jax.jit(pipeline)


def imagenet_preprocess(images_hwc_uint8, *, resize_short: int, crop: int,
                        use_bf16: bool = True):
    """Pallas equivalent of ImageNetStimuliPreProcessing.forward.

    Takes a decoded RGB uint8 image of shape (H, W, 3) -- or a same-shape batch
    (N, H, W, 3) to amortize dispatch/grid overheads -- instead of a file path.
    Returns float32 (N, 3, crop, crop); for a single (H, W, 3) input N == 1,
    matching the module's unsqueeze(0).
    """
    images = jnp.asarray(images_hwc_uint8)
    if images.ndim == 3:
        images = images[None]
    N, H, W, C = images.shape
    assert C == 3, "expects RGB input (the alpha channel is discarded upstream)"

    # torchvision Resize(int): shorter side -> resize_short, aspect ratio preserved.
    if H <= W:
        out_h = resize_short
        out_w = int(resize_short * W / H)
    else:
        out_w = resize_short
        out_h = int(resize_short * H / W)
    assert out_h >= crop and out_w >= crop

    rh_full = _pil_bilinear_matrix(H, out_h)   # (out_h, H)
    rw_full = _pil_bilinear_matrix(W, out_w)   # (out_w, W)

    # CenterCrop(crop) == selecting the cropped rows/cols of the resized image.
    top = int(round((out_h - crop) / 2.0))
    left = int(round((out_w - crop) / 2.0))

    compute_dtype = jnp.bfloat16 if use_bf16 else jnp.float32
    # Fold ToTensor's 1/255 into the row-resize matrix (the whole map is linear).
    rh = jnp.asarray(rh_full[top:top + crop] * (1.0 / 255.0), dtype=compute_dtype)
    rwt = jnp.asarray(rw_full[left:left + crop].T, dtype=compute_dtype)

    # Normalize((y - mean) / std) as a per-channel FMA: y * scale + bias.
    scale = jnp.asarray(1.0 / IMAGENET_STD)             # (3,)
    bias = jnp.asarray(-IMAGENET_MEAN / IMAGENET_STD)   # (3,)

    # Prefer the single-convert uint8 -> compute-dtype kernel; fall back to the
    # int32-hop variant only if the direct conversion fails to lower on this
    # jax/Mosaic version.
    last_err = None
    for cast_mode in ("direct", "safe"):
        try:
            fn = _build_pipeline(N, H, W, crop, use_bf16, cast_mode)
            out = fn(images, rh, rwt, scale, bias)
            return jax.block_until_ready(out)
        except Exception as err:  # lowering/compile failure -> try the safe cast
            last_err = err
    raise last_err


def _reference(image_hwc_uint8, *, resize_short: int, crop: int):
    """Pure numpy reference of resize -> crop -> totensor -> normalize."""
    H, W, _ = image_hwc_uint8.shape
    if H <= W:
        out_h, out_w = resize_short, int(resize_short * W / H)
    else:
        out_h, out_w = int(resize_short * H / W), resize_short
    rh = _pil_bilinear_matrix(H, out_h)
    rw = _pil_bilinear_matrix(W, out_w)
    top = int(round((out_h - crop) / 2.0))
    left = int(round((out_w - crop) / 2.0))
    img = np.asarray(image_hwc_uint8).astype(np.float32) / 255.0  # HWC
    chans = []
    for c in range(3):
        resized = rh @ img[:, :, c] @ rw.T
        cropped = resized[top:top + crop, left:left + crop]
        chans.append((cropped - IMAGENET_MEAN[c]) / IMAGENET_STD[c])
    return np.stack(chans, axis=0)[None]


if __name__ == "__main__":
    key = jax.random.PRNGKey(0)
    keys = jax.random.split(key, 3)

    def rand_img(k, shape):
        return jax.random.randint(k, shape, 0, 256, dtype=jnp.int32).astype(jnp.uint8)

    # Case 1: batched pair of landscape images (W > H), bf16 default, row-split grid.
    batch = rand_img(keys[0], (2, 48, 56, 3))
    out = imagenet_preprocess(batch, resize_short=40, crop=32)
    out = jax.block_until_ready(out)
    assert out.shape == (2, 3, 32, 32), out.shape
    for n in range(2):
        ref = _reference(np.asarray(batch[n]), resize_short=40, crop=32)
        np.testing.assert_allclose(np.asarray(out[n:n + 1]), ref, rtol=2e-2, atol=5e-2)

    # Case 2: single portrait image (H > W), f32 compute, row-split grid, tight check.
    img_p = rand_img(keys[1], (56, 44, 3))
    out = imagenet_preprocess(img_p, resize_short=40, crop=32, use_bf16=False)
    out = jax.block_until_ready(out)
    assert out.shape == (1, 3, 32, 32), out.shape
    ref = _reference(np.asarray(img_p), resize_short=40, crop=32)
    np.testing.assert_allclose(np.asarray(out), ref, rtol=1e-4, atol=1e-4)

    # Case 3: small crop (unsplit grid, contract-over-W-first variant), bf16 default.
    img_s = rand_img(keys[2], (20, 24, 3))
    out = imagenet_preprocess(img_s, resize_short=16, crop=8)
    out = jax.block_until_ready(out)
    assert out.shape == (1, 3, 8, 8), out.shape
    ref = _reference(np.asarray(img_s), resize_short=16, crop=8)
    np.testing.assert_allclose(np.asarray(out), ref, rtol=2e-2, atol=5e-2)

    print("KERNEL_OK")
</pallas_src>

<mosaic_0001>
module attributes {stable_mosaic.version = 11 : i64} {
  func.func @kernel(%arg0: i32, %arg1: i32, %arg2: i32, %arg3: memref<1x1x48x56xi8, #tpu.memory_space<vmem>>, %arg4: memref<16x48xbf16, #tpu.memory_space<vmem>>, %arg5: memref<56x32xbf16, #tpu.memory_space<vmem>>, %arg6: memref<3xf32, #tpu.memory_space<smem>>, %arg7: memref<3xf32, #tpu.memory_space<smem>>, %arg8: memref<1x1x16x32xf32, #tpu.memory_space<vmem>>) attributes {dimension_semantics = [#tpu.dimension_semantics<parallel>, #tpu.dimension_semantics<parallel>, #tpu.dimension_semantics<parallel>], iteration_bounds = array<i64: 2, 3, 2>, scalar_prefetch = 0 : i64, scratch_operands = 0 : i64, tpu.core_type = #tpu.core_type<tc>, window_params = [{transform_indices = @transform_0, window_bounds = array<i64: 1, 1, 48, 56>}, {transform_indices = @transform_1, window_bounds = array<i64: 16, 48>}, {pipeline_mode = #tpu.pipeline_mode<synchronous>, transform_indices = @transform_2, window_bounds = array<i64: 56, 32>}, {transform_indices = @transform_3, window_bounds = array<i64: 3>}, {transform_indices = @transform_4, window_bounds = array<i64: 3>}, {transform_indices = @transform_5, window_bounds = array<i64: 1, 1, 16, 32>}]} {
    %c0 = arith.constant 0 : index
    %c0_0 = arith.constant 0 : index
    %c0_1 = arith.constant 0 : index
    %c0_2 = arith.constant 0 : index
    %0 = vector.load %arg3[%c0, %c0_0, %c0_1, %c0_2] : memref<1x1x48x56xi8, #tpu.memory_space<vmem>>, vector<1x1x48x56xi8>
    %1 = vector.shape_cast %0 : vector<1x1x48x56xi8> to vector<48x56xi8>
    %2 = arith.uitofp %1 : vector<48x56xi8> to vector<48x56xbf16>
    %c0_3 = arith.constant 0 : index
    %c0_4 = arith.constant 0 : index
    %3 = vector.load %arg4[%c0_3, %c0_4] : memref<16x48xbf16, #tpu.memory_space<vmem>>, vector<16x48xbf16>
    %cst = arith.constant dense<0.000000e+00> : vector<16x56xf32>
    %4 = tpu.matmul %3, %2, %cst {dimension_numbers = #tpu.dot_dimension_numbers<[1], [0], [0], [1], [0, 0, 1, 1], [], []>} : vector<16x48xbf16>, vector<48x56xbf16>, vector<16x56xf32> -> vector<16x56xf32>
    %5 = arith.truncf %4 : vector<16x56xf32> to vector<16x56xbf16>
    %c0_5 = arith.constant 0 : index
    %c0_6 = arith.constant 0 : index
    %6 = vector.load %arg5[%c0_5, %c0_6] : memref<56x32xbf16, #tpu.memory_space<vmem>>, vector<56x32xbf16>
    %cst_7 = arith.constant dense<0.000000e+00> : vector<16x32xf32>
    %7 = tpu.matmul %5, %6, %cst_7 {dimension_numbers = #tpu.dot_dimension_numbers<[1], [0], [0], [1], [0, 0, 1, 1], [], []>} : vector<16x56xbf16>, vector<56x32xbf16>, vector<16x32xf32> -> vector<16x32xf32>
    %8 = arith.index_cast %arg1 : i32 to index
    %9 = memref.load %arg6[%8] : memref<3xf32, #tpu.memory_space<smem>>
    %10 = vector.broadcast %9 : f32 to vector<16x32xf32>
    %11 = arith.mulf %7, %10 : vector<16x32xf32>
    %12 = arith.index_cast %arg1 : i32 to index
    %13 = memref.load %arg7[%12] : memref<3xf32, #tpu.memory_space<smem>>
    %14 = vector.broadcast %13 : f32 to vector<16x32xf32>
    %15 = arith.addf %11, %14 : vector<16x32xf32>
    %c0_8 = arith.constant 0 : index
    %c0_9 = arith.constant 0 : index
    %c0_10 = arith.constant 0 : index
    %c0_11 = arith.constant 0 : index
    %16 = vector.load %arg8[%c0_8, %c0_9, %c0_10, %c0_11] : memref<1x1x16x32xf32, #tpu.memory_space<vmem>>, vector<1x1x16x32xf32>
    %17 = vector.shape_cast %16 : vector<1x1x16x32xf32> to vector<16x32xf32>
    %18 = vector.shape_cast %15 : vector<16x32xf32> to vector<1x1x16x32xf32>
    tpu.vector_store %arg8[%c0_8, %c0_9, %c0_10, %c0_11], %18 {strides = array<i32>} : memref<1x1x16x32xf32, #tpu.memory_space<vmem>>, vector<1x1x16x32xf32>,
    return
  }
  func.func @transform_0(%arg0: i32, %arg1: i32, %arg2: i32) -> (i32, i32, i32, i32) {
    %c0_i32 = arith.constant 0 : i32
    %c0_i32_0 = arith.constant 0 : i32
    %c0_i32_1 = arith.constant 0 : i32
    return %arg0, %arg1, %c0_i32, %c0_i32_0 : i32, i32, i32, i32
  }
  func.func @transform_1(%arg0: i32, %arg1: i32, %arg2: i32) -> (i32, i32) {
    %c0_i32 = arith.constant 0 : i32
    %c0_i32_0 = arith.constant 0 : i32
    return %arg2, %c0_i32 : i32, i32
  }
  func.func @transform_2(%arg0: i32, %arg1: i32, %arg2: i32) -> (i32, i32) {
    %c0_i32 = arith.constant 0 : i32
    %c0_i32_0 = arith.constant 0 : i32
    %c0_i32_1 = arith.constant 0 : i32
    return %c0_i32, %c0_i32_0 : i32, i32
  }
  func.func @transform_3(%arg0: i32, %arg1: i32, %arg2: i32) -> i32 {
    %c0_i32 = arith.constant 0 : i32
    %c0_i32_0 = arith.constant 0 : i32
    return %c0_i32 : i32
  }
  func.func @transform_4(%arg0: i32, %arg1: i32, %arg2: i32) -> i32 {
    %c0_i32 = arith.constant 0 : i32
    %c0_i32_0 = arith.constant 0 : i32
    return %c0_i32 : i32
  }
  func.func @transform_5(%arg0: i32, %arg1: i32, %arg2: i32) -> (i32, i32, i32, i32) {
    %c0_i32 = arith.constant 0 : i32
    %c0_i32_0 = arith.constant 0 : i32
    return %arg0, %arg1, %arg2, %c0_i32 : i32, i32, i32, i32
  }
}

module attributes {stable_mosaic.version = 11 : i64} {
  func.func @kernel(%arg0: i32, %arg1: i32, %arg2: i32, %arg3: memref<1x1x48x56xi8, #tpu.memory_space<vmem>>, %arg4: memref<16x48xbf16, #tpu.memory_space<vmem>>, %arg5: memref<56x32xbf16, #tpu.memory_space<vmem>>, %arg6: memref<3xf32, #tpu.memory_space<smem>>, %arg7: memref<3xf32, #tpu.memory_space<smem>>, %arg8: memref<1x1x16x32xf32, #tpu.memory_space<vmem>>) attributes {dimension_semantics = [#tpu.dimension_semantics<parallel>, #tpu.dimension_semantics<parallel>, #tpu.dimension_semantics<parallel>], iteration_bounds = array<i64: 2, 3, 2>, scalar_prefetch = 0 : i64, scratch_operands = 0 : i64, tpu.core_type = #tpu.core_type<tc>, window_params = [{transform_indices = @transform_0, window_bounds = array<i64: 1, 1, 48, 56>}, {transform_indices = @transform_1, window_bounds = array<i64: 16, 48>}, {pipeline_mode = #tpu.pipeline_mode<synchronous>, transform_indices = @transform_2, window_bounds = array<i64: 56, 32>}, {transform_indices = @transform_3, window_bounds = array<i64: 3>}, {transform_indices = @transform_4, window_bounds = array<i64: 3>}, {transform_indices = @transform_5, window_bounds = array<i64: 1, 1, 16, 32>}]} {
    %c0 = arith.constant 0 : index
    %c0_0 = arith.constant 0 : index
    %c0_1 = arith.constant 0 : index
    %c0_2 = arith.constant 0 : index
    %0 = vector.load %arg3[%c0, %c0_0, %c0_1, %c0_2] : memref<1x1x48x56xi8, #tpu.memory_space<vmem>>, vector<1x1x48x56xi8>
    %1 = vector.shape_cast %0 : vector<1x1x48x56xi8> to vector<48x56xi8>
    %2 = arith.extui %1 : vector<48x56xi8> to vector<48x56xi32>
    %3 = arith.sitofp %2 : vector<48x56xi32> to vector<48x56xf32>
    %4 = arith.truncf %3 : vector<48x56xf32> to vector<48x56xbf16>
    %c0_3 = arith.constant 0 : index
    %c0_4 = arith.constant 0 : index
    %5 = vector.load %arg4[%c0_3, %c0_4] : memref<16x48xbf16, #tpu.memory_space<vmem>>, vector<16x48xbf16>
    %cst = arith.constant dense<0.000000e+00> : vector<16x56xf32>
    %6 = tpu.matmul %5, %4, %cst {dimension_numbers = #tpu.dot_dimension_numbers<[1], [0], [0], [1], [0, 0, 1, 1], [], []>} : vector<16x48xbf16>, vector<48x56xbf16>, vector<16x56xf32> -> vector<16x56xf32>
    %7 = arith.truncf %6 : vector<16x56xf32> to vector<16x56xbf16>
    %c0_5 = arith.constant 0 : index
    %c0_6 = arith.constant 0 : index
    %8 = vector.load %arg5[%c0_5, %c0_6] : memref<56x32xbf16, #tpu.memory_space<vmem>>, vector<56x32xbf16>
    %cst_7 = arith.constant dense<0.000000e+00> : vector<16x32xf32>
    %9 = tpu.matmul %7, %8, %cst_7 {dimension_numbers = #tpu.dot_dimension_numbers<[1], [0], [0], [1], [0, 0, 1, 1], [], []>} : vector<16x56xbf16>, vector<56x32xbf16>, vector<16x32xf32> -> vector<16x32xf32>
    %10 = arith.index_cast %arg1 : i32 to index
    %11 = memref.load %arg6[%10] : memref<3xf32, #tpu.memory_space<smem>>
    %12 = vector.broadcast %11 : f32 to vector<16x32xf32>
    %13 = arith.mulf %9, %12 : vector<16x32xf32>
    %14 = arith.index_cast %arg1 : i32 to index
    %15 = memref.load %arg7[%14] : memref<3xf32, #tpu.memory_space<smem>>
    %16 = vector.broadcast %15 : f32 to vector<16x32xf32>
    %17 = arith.addf %13, %16 : vector<16x32xf32>
    %c0_8 = arith.constant 0 : index
    %c0_9 = arith.constant 0 : index
    %c0_10 = arith.constant 0 : index
    %c0_11 = arith.constant 0 : index
    %18 = vector.load %arg8[%c0_8, %c0_9, %c0_10, %c0_11] : memref<1x1x16x32xf32, #tpu.memory_space<vmem>>, vector<1x1x16x32xf32>
    %19 = vector.shape_cast %18 : vector<1x1x16x32xf32> to vector<16x32xf32>
    %20 = vector.shape_cast %17 : vector<16x32xf32> to vector<1x1x16x32xf32>
    tpu.vector_store %arg8[%c0_8, %c0_9, %c0_10, %c0_11], %20 {strides = array<i32>} : memref<1x1x16x32xf32, #tpu.memory_space<vmem>>, vector<1x1x16x32xf32>,
    return
  }
  func.func @transform_0(%arg0: i32, %arg1: i32, %arg2: i32) -> (i32, i32, i32, i32) {
    %c0_i32 = arith.constant 0 : i32
    %c0_i32_0 = arith.constant 0 : i32
    %c0_i32_1 = arith.constant 0 : i32
    return %arg0, %arg1, %c0_i32, %c0_i32_0 : i32, i32, i32, i32
  }
  func.func @transform_1(%arg0: i32, %arg1: i32, %arg2: i32) -> (i32, i32) {
    %c0_i32 = arith.constant 0 : i32
    %c0_i32_0 = arith.constant 0 : i32
    return %arg2, %c0_i32 : i32, i32
  }
  func.func @transform_2(%arg0: i32, %arg1: i32, %arg2: i32) -> (i32, i32) {
    %c0_i32 = arith.constant 0 : i32
    %c0_i32_0 = arith.constant 0 : i32
    %c0_i32_1 = arith.constant 0 : i32
    return %c0_i32, %c0_i32_0 : i32, i32
  }
  func.func @transform_3(%arg0: i32, %arg1: i32, %arg2: i32) -> i32 {
    %c0_i32 = arith.constant 0 : i32
    %c0_i32_0 = arith.constant 0 : i32
    return %c0_i32 : i32
  }
  func.func @transform_4(%arg0: i32, %arg1: i32, %arg2: i32) -> i32 {
    %c0_i32 = arith.constant 0 : i32
    %c0_i32_0 = arith.constant 0 : i32
    return %c0_i32 : i32
  }
  func.func @transform_5(%arg0: i32, %arg1: i32, %arg2: i32) -> (i32, i32, i32, i32) {
    %c0_i32 = arith.constant 0 : i32
    %c0_i32_0 = arith.constant 0 : i32
    return %arg0, %arg1, %arg2, %c0_i32 : i32, i32, i32, i32
  }
}

</mosaic_0001>

<llo_original>
// kernel: pipeline.1
$region0: #{pipeline.1}
  #allocation0 [shape = 'u32[]', space=smem, size = 0x4, offset = 0x4, fixed_abs, tag = 'smem constant byte address 0x4 - core index']
  #allocation1 [shape = 'u32[144,128]{1,0:T(1,128)}', space=vmem, size = 0x12000, scoped, tag = 'internal scratch']
  %s0 = inlined_call_operand.hbm [shape: u8[2,3,48,56], index: 0, kind: input, shape index: {}]
  %s1 = inlined_call_operand.vmem [shape: bf16[32,48], index: 1, kind: input, shape index: {}]
  %s2 = inlined_call_operand.vmem [shape: bf16[56,32], index: 2, kind: input, shape index: {}]
  %s3 = inlined_call_operand.vmem [shape: f32[3], index: 3, kind: input, shape index: {}]
  %s4 = inlined_call_operand.vmem [shape: f32[3], index: 4, kind: input, shape index: {}]
  %s5 = inlined_call_operand.hbm [shape: f32[2,3,32,32], index: 5, kind: output, shape index: {}]
  %s6 = sld [smem:[#allocation0]]
  $region65: #{pipeline.1} parent=0
    _
  %s8 = ssub.s32 1, %s6
  %s9 = scalar_select 0, %s8, %s6
  $region1: #{pipeline.1} parent=0
    #allocation2 [shape = 'u8[12288]{0}', space=vmem, size = 0x3000, scoped, tag = 'input window, operand 0']
    #allocation3 [shape = 's32[2]{0}', space=sflag, size = 0x8, scoped, tag = 'scoped memory for pipeline.1']
    #allocation4 [shape = 's32[2]{0}', space=sflag, size = 0x8, scoped, tag = 'scoped memory for pipeline.1']
    #allocation5 [shape = 's32[2]{0}', space=sflag, size = 0x8, scoped, tag = 'scoped memory for pipeline.1']
    #allocation6 [shape = 'u8[512]{0}', space=smem, size = 0x200, scoped, tag = 'input window, operand 3, single buffered']
    #allocation7 [shape = 'u8[512]{0}', space=smem, size = 0x200, scoped, tag = 'input window, operand 4, single buffered']
    #allocation8 [shape = 's32[1]{0}', space=sflag, size = 0x4, scoped, tag = 'scoped memory for pipeline.1']
    #allocation9 [shape = 'u8[16384]{0}', space=vmem, size = 0x4000, scoped, tag = 'output window, operand 0']
    %10 = vsyncpa [#allocation3], 0
    %s11 = scalar_lea.sflag [#allocation3], 1
    %12 = vsyncpa %s11, 0
    %13 = vsyncpa [#allocation5], 0
    %14 = vsyncpa [#allocation8], 0
    %15 = vsyncpa [#allocation4], 0
    %s16 = scalar_lea.sflag [#allocation4], 1
    %17 = vsyncpa %s16, 0
    loop: start=0, step=1, limit=14
    $region2: #{pipeline.1} parent=1 // loop_pre_header
      _
    $region3: #{pipeline.1} parent=1 // loop_header
      %s19 = sphi 0, %s23
      %p20 = scmp.ge.s32.totalorder %s19, 14
      %s26 = sphi 0, %s45
      %s27 = sphi 0, %s41
      %s28 = sphi 0, %s37
      %s29 = sphi 0, %s26
      %s30 = sphi 0, %s27
      %s31 = sphi 0, %s28
      %s32 = sphi 0, %s29
      %s33 = sphi 0, %s30
      %s34 = sphi 0, %s31
      %s50 = sphi 0, %s52
      %s53 = sphi 0, %s50
      %s54 = sphi 0, %s53
      %s70 = sphi 0, %s54
      %s76 = sphi 0, %s78
      %s79 = sphi 0, %s76
      %s80 = sphi 0, %s79
      %s96 = sphi 0, %s80
      %s100 = sphi 0, %s100
      %s102 = sphi 0, %s100
      %s103 = sphi 0, %s102
      %s117 = sphi 0, %s103
      %s121 = sphi 0, %s121
      %s123 = sphi 0, %s121
      %s124 = sphi 0, %s123
      %s138 = sphi 0, %s124
      %s142 = sphi 0, %s142
      %s144 = sphi 0, %s142
      %s145 = sphi 0, %s144
      %s159 = sphi 0, %s145
      %s169 = sphi 0, %s171
      %s172 = sphi 0, %s169
      %s173 = sphi 0, %s172
      %s189 = sphi 0, %s173
    $region4: #{pipeline.1} parent=1 // loop_header_branch
      %22 = sbr.rel (%p20) target = $region8
    $region5: #{pipeline.1} parent=1 // loop_body
      %s24 = ssub.s32 %s19, 1
      %s25 = ssub.s32 %s19, 2
      %s35 = sadd.s32 1, %s28
      %p36 = scmp.ge.s32.totalorder %s35, 2
      %s37 = scalar_select %p36, 0, %s35
      %s38 = sadd.s32 1, %s27
      %s39 = scalar_select %p36, %s38, %s27
      %p40 = scmp.ge.s32.totalorder %s39, 3
      %s41 = scalar_select %p40, 0, %s39
      %s42 = sadd.s32 1, %s26
      %s43 = scalar_select %p40, %s42, %s26
      %p44 = scmp.ge.s32.totalorder %s43, 2
      %s45 = scalar_select %p44, 0, %s43
      %s46 = ssub.s32 %s26, %s45
      %s47 = ssub.s32 %s27, %s41
      %s48 = sor.u32 %s46, %s47
      %p49 = scmp.eq.s32.totalorder %s48, 0
      %s51 = sadd.s32 %s50, 1
      %s52 = scalar_select %p49, %s50, %s51
      %p55 = pneg %p49
      %p56 = scmp.eq.s32.totalorder %s19, 11
      %p57 = por %p55, %p56
      %p58 = scmp.ne.s32.totalorder %s50, %s53
      %p59 = scmp.eq.s32.totalorder %s19, 0
      %p60 = por %p58, %p59
      %p61 = scmp.ne.s32.totalorder %s50, %s53
      %p62 = scmp.eq.s32.totalorder %s24, 11
      %p63 = por %p61, %p62
      %p64 = scmp.ne.s32.totalorder %s53, %s54
      %p65 = scmp.eq.s32.totalorder %s24, 0
      %p66 = por %p64, %p65
      %p67 = scmp.ne.s32.totalorder %s53, %s54
      %p68 = scmp.eq.s32.totalorder %s25, 11
      %p69 = por %p67, %p68
      %p71 = scmp.ne.s32.totalorder %s54, %s70
      %p72 = scmp.eq.s32.totalorder %s25, 0
      %p73 = por %p71, %p72
      %s74 = ssub.s32 %s28, %s37
      %p75 = scmp.eq.s32.totalorder %s74, 0
      %s77 = sadd.s32 %s76, 1
      %s78 = scalar_select %p75, %s76, %s77
      %p81 = pneg %p75
      %p82 = scmp.eq.s32.totalorder %s19, 11
      %p83 = por %p81, %p82
      %p84 = scmp.ne.s32.totalorder %s76, %s79
      %p85 = scmp.eq.s32.totalorder %s19, 0
      %p86 = por %p84, %p85
      %p87 = scmp.ne.s32.totalorder %s76, %s79
      %p88 = scmp.eq.s32.totalorder %s24, 11
      %p89 = por %p87, %p88
      %p90 = scmp.ne.s32.totalorder %s79, %s80
      %p91 = scmp.eq.s32.totalorder %s24, 0
      %p92 = por %p90, %p91
      %p93 = scmp.ne.s32.totalorder %s79, %s80
      %p94 = scmp.eq.s32.totalorder %s25, 11
      %p95 = por %p93, %p94
      %p97 = scmp.ne.s32.totalorder %s80, %s96
      %p98 = scmp.eq.s32.totalorder %s25, 0
      %p99 = por %p97, %p98
      %s101 = sadd.s32 %s100, 1
      %p104 = scmp.eq.s32.totalorder %s19, 11
      %p105 = scmp.ne.s32.totalorder %s100, %s102
      %p106 = scmp.eq.s32.totalorder %s19, 0
      %p107 = por %p105, %p106
      %p108 = scmp.ne.s32.totalorder %s100, %s102
      %p109 = scmp.eq.s32.totalorder %s24, 11
      %p110 = por %p108, %p109
      %p111 = scmp.ne.s32.totalorder %s102, %s103
      %p112 = scmp.eq.s32.totalorder %s24, 0
      %p113 = por %p111, %p112
      %p114 = scmp.ne.s32.totalorder %s102, %s103
      %p115 = scmp.eq.s32.totalorder %s25, 11
      %p116 = por %p114, %p115
      %p118 = scmp.ne.s32.totalorder %s103, %s117
      %p119 = scmp.eq.s32.totalorder %s25, 0
      %p120 = por %p118, %p119
      %s122 = sadd.s32 %s121, 1
      %p125 = scmp.eq.s32.totalorder %s19, 11
      %p126 = scmp.ne.s32.totalorder %s121, %s123
      %p127 = scmp.eq.s32.totalorder %s19, 0
      %p128 = por %p126, %p127
      %p129 = scmp.ne.s32.totalorder %s121, %s123
      %p130 = scmp.eq.s32.totalorder %s24, 11
      %p131 = por %p129, %p130
      %p132 = scmp.ne.s32.totalorder %s123, %s124
      %p133 = scmp.eq.s32.totalorder %s24, 0
      %p134 = por %p132, %p133
      %p135 = scmp.ne.s32.totalorder %s123, %s124
      %p136 = scmp.eq.s32.totalorder %s25, 11
      %p137 = por %p135, %p136
      %p139 = scmp.ne.s32.totalorder %s124, %s138
      %p140 = scmp.eq.s32.totalorder %s25, 0
      %p141 = por %p139, %p140
      %s143 = sadd.s32 %s142, 1
      %p146 = scmp.eq.s32.totalorder %s19, 11
      %p147 = scmp.ne.s32.totalorder %s142, %s144
      %p148 = scmp.eq.s32.totalorder %s19, 0
      %p149 = por %p147, %p148
      %p150 = scmp.ne.s32.totalorder %s142, %s144
      %p151 = scmp.eq.s32.totalorder %s24, 11
      %p152 = por %p150, %p151
      %p153 = scmp.ne.s32.totalorder %s144, %s145
      %p154 = scmp.eq.s32.totalorder %s24, 0
      %p155 = por %p153, %p154
      %p156 = scmp.ne.s32.totalorder %s144, %s145
      %p157 = scmp.eq.s32.totalorder %s25, 11
      %p158 = por %p156, %p157
      %p160 = scmp.ne.s32.totalorder %s145, %s159
      %p161 = scmp.eq.s32.totalorder %s25, 0
      %p162 = por %p160, %p161
      %s163 = ssub.s32 %s26, %s45
      %s164 = ssub.s32 %s27, %s41
      %s165 = sor.u32 %s163, %s164
      %s166 = ssub.s32 %s28, %s37
      %s167 = sor.u32 %s165, %s166
      %p168 = scmp.eq.s32.totalorder %s167, 0
      %s170 = sadd.s32 %s169, 1
      %s171 = scalar_select %p168, %s169, %s170
      %p174 = pneg %p168
      %p175 = scmp.eq.s32.totalorder %s19, 11
      %p176 = por %p174, %p175
      %p177 = scmp.ne.s32.totalorder %s169, %s172
      %p178 = scmp.eq.s32.totalorder %s19, 0
      %p179 = por %p177, %p178
      %p180 = scmp.ne.s32.totalorder %s169, %s172
      %p181 = scmp.eq.s32.totalorder %s24, 11
      %p182 = por %p180, %p181
      %p183 = scmp.ne.s32.totalorder %s172, %s173
      %p184 = scmp.eq.s32.totalorder %s24, 0
      %p185 = por %p183, %p184
      %p186 = scmp.ne.s32.totalorder %s172, %s173
      %p187 = scmp.eq.s32.totalorder %s25, 11
      %p188 = por %p186, %p187
      %p190 = scmp.ne.s32.totalorder %s173, %s189
      %p191 = scmp.eq.s32.totalorder %s25, 0
      %p192 = por %p190, %p191
      %p193 = scmp.le.s32.totalorder 1, %s19
      %p194 = scmp.lt.s32.totalorder %s19, 13
      %p195 = pnand %p193, %p194
      %p196 = pneg %p195
      // Predicated region
      $region9: #{pipeline.1} parent=5 // pred_check
        _
      $region10: #{pipeline.1} parent=5 // pred_check_branch
        %198 = sbr.rel (%p195) target = $region12
      $region11: #{pipeline.1} parent=5 // pred_region
        %s199 = ssub.s32 %s19, 1
        // Predicated region
        $region13: #{pipeline.1} parent=11 // pred_check
          %p200 = pneg %p113
        $region14: #{pipeline.1} parent=11 // pred_check_branch
          %202 = sbr.rel (%p200) target = $region16
        $region15: #{pipeline.1} parent=11 // pred_region
          _
        $region16: #{pipeline.1} parent=11 // pred_fallthru
          _
        // Predicated region
        $region17: #{pipeline.1} parent=11 // pred_check
          %p203 = pneg %p134
        $region18: #{pipeline.1} parent=11 // pred_check_branch
          %205 = sbr.rel (%p203) target = $region20
        $region19: #{pipeline.1} parent=11 // pred_region
          %s207 = ssub.s32 16, 16
          %208 = vsyncadd [#allocation5], %s207
          %s210 = sshll.u32 %s3, 4
          %s211 = int_to_ptr.vmem [resolvable:$true] %s210
          %213 = dma.vmem_to_smem %s211, 16, [#allocation6], [#allocation5]
        $region20: #{pipeline.1} parent=11 // pred_fallthru
          _
        // Predicated region
        $region21: #{pipeline.1} parent=11 // pred_check
          %p214 = pneg %p155
        $region22: #{pipeline.1} parent=11 // pred_check_branch
          %216 = sbr.rel (%p214) target = $region24
        $region23: #{pipeline.1} parent=11 // pred_region
          %s218 = ssub.s32 16, 16
          %219 = vsyncadd [#allocation8], %s218
          %s221 = sshll.u32 %s4, 4
          %s222 = int_to_ptr.vmem [resolvable:$true] %s221
          %224 = dma.vmem_to_smem %s222, 16, [#allocation7], [#allocation8]
        $region24: #{pipeline.1} parent=11 // pred_fallthru
          _
      $region12: #{pipeline.1} parent=5 // pred_fallthru
        _
      %p225 = scmp.lt.s32.totalorder %s19, 12
      // Predicated region
      $region25: #{pipeline.1} parent=5 // pred_check
        %p226 = pneg %p225
      $region26: #{pipeline.1} parent=5 // pred_check_branch
        %228 = sbr.rel (%p226) target = $region28
      $region27: #{pipeline.1} parent=5 // pred_region
        // Predicated region
        $region29: #{pipeline.1} parent=27 // pred_check
          %p229 = pneg %p60
        $region30: #{pipeline.1} parent=27 // pred_check_branch
          %231 = sbr.rel (%p229) target = $region32
        $region31: #{pipeline.1} parent=27 // pred_region
          %s232 = sand.u32 %s50, 1
          %s233 = scalar_lea.sflag [#allocation3], %s232
          %s234 = sand.u32 %s50, 1
          %s235 = smul.addr %s234, 12
          %s236 = scalar_lea.vmem [#allocation2], %s235
          %s238 = ssub.s32 192, 192
          %239 = vsyncadd %s233, %s238
          %s240 = smul.addr %s27, 6
          %s241 = smul.addr %s26, 18
          %s242 = sadd.s32 %s240, %s241
          %s243 = smul.addr %s242, 32
          %s244 = scalar_lea.hbm %s0, %s243
          %s245 = sshll.u32 %s236, 4
          %s246 = int_to_ptr.vmem [resolvable:$true] %s245
          %251 = dma.hbm_to_vmem [thread:$0]  %s244, 192, %s246, %s233, 32, 32, 2
        $region32: #{pipeline.1} parent=27 // pred_fallthru
          _
        // Predicated region
        $region33: #{pipeline.1} parent=27 // pred_check
          %p252 = pneg %p86
        $region34: #{pipeline.1} parent=27 // pred_check_branch
          %254 = sbr.rel (%p252) target = $region36
        $region35: #{pipeline.1} parent=27 // pred_region
          %s255 = smul.u32 2, %s28
          %p256 = scmp.lt.s32.totalorder %s255, 3
          %s257 = scalar_select %p256, %s255, 3
          %s258 = smul.addr %s257, 4
          %s259 = scalar_lea.vmem %s1, %s258
          %s260 = smul.u32 2, %s28
        $region36: #{pipeline.1} parent=27 // pred_fallthru
          _
      $region28: #{pipeline.1} parent=5 // pred_fallthru
        _
      %p261 = scmp.le.s32.totalorder 1, %s19
      %p262 = scmp.lt.s32.totalorder %s19, 13
      %p263 = pnand %p261, %p262
      %p264 = pneg %p263
      // Predicated region
      $region37: #{pipeline.1} parent=5 // pred_check
        _
      $region38: #{pipeline.1} parent=5 // pred_check_branch
        %266 = sbr.rel (%p263) target = $region40
      $region39: #{pipeline.1} parent=5 // pred_region
        %s267 = ssub.s32 %s19, 1
        %s268 = sand.u32 %s53, 1
        %s269 = scalar_lea.sflag [#allocation3], %s268
        %s270 = sand.u32 %s53, 1
        %s271 = smul.addr %s270, 12
        %s272 = scalar_lea.vmem [#allocation2], %s271
        // Predicated region
        $region41: #{pipeline.1} parent=39 // pred_check
          %p273 = pneg %p66
        $region42: #{pipeline.1} parent=39 // pred_check_branch
          %275 = sbr.rel (%p273) target = $region44
        $region43: #{pipeline.1} parent=39 // pred_region
          %276 = dma.done %s269, 192
        $region44: #{pipeline.1} parent=39 // pred_fallthru
          _
        // Predicated region
        $region45: #{pipeline.1} parent=39 // pred_check
          %p277 = pneg %p134
        $region46: #{pipeline.1} parent=39 // pred_check_branch
          %279 = sbr.rel (%p277) target = $region48
        $region47: #{pipeline.1} parent=39 // pred_region
          %280 = dma.done [#allocation5], 16
        $region48: #{pipeline.1} parent=39 // pred_fallthru
          _
        // Predicated region
        $region49: #{pipeline.1} parent=39 // pred_check
          %p281 = pneg %p155
        $region50: #{pipeline.1} parent=39 // pred_check_branch
          %283 = sbr.rel (%p281) target = $region52
        $region51: #{pipeline.1} parent=39 // pred_region
          %284 = dma.done [#allocation8], 16
        $region52: #{pipeline.1} parent=39 // pred_fallthru
          _
        %285 = sfence
        %s286 = sand.u32 %s53, 1
        %s287 = scalar_lea.sflag [#allocation3], %s286
        %s288 = sand.u32 %s53, 1
        %s289 = smul.addr %s288, 12
        %s290 = scalar_lea.vmem [#allocation2], %s289
        %p291 = pneg %p66
        %p292 = pneg %p63
        %s293 = smul.u32 2, %s31
        %p294 = scmp.lt.s32.totalorder %s293, 3
        %s295 = scalar_select %p294, %s293, 3
        %s296 = smul.addr %s295, 4
        %s297 = scalar_lea.vmem %s1, %s296
        %p298 = pneg %p92
        %p299 = pneg %p89
        %p300 = pneg %p113
        %p301 = pneg %p110
        %p302 = pneg %p134
        %p303 = pneg %p131
        %p304 = pneg %p155
        %p305 = pneg %p152
        %p306 = pneg %p185
        %p307 = pneg %p182
        %s308 = sand.u32 %s172, 1
        %s309 = scalar_lea.sflag [#allocation4], %s308
        %s310 = sand.u32 %s172, 1
        %s311 = smul.addr %s310, 16
        %s312 = scalar_lea.vmem [#allocation9], %s311
        %s313 = smul.u32 2, %s31
        %p314 = scmp.lt.s32.totalorder %s313, 3
        %s315 = scalar_select %p314, %s313, 3
        %s316 = smul.addr %s315, 4
        %s317 = scalar_lea.vmem %s1, %s316
        %s318 = smul.u32 2, %s31
        %s319 = smul.u32 2, %s31
        %v321 = vld [vmem:[%s272] sm:$0x3]
        %v322 = vld [vmem:[%s272 + $0x2] sm:$0x3]
        %v323 = vld [vmem:[%s272 + $0x4] sm:$0x3]
        %v324 = vld [vmem:[%s272 + $0x6] sm:$0x3]
        %v325 = vld [vmem:[%s272 + $0x8] sm:$0x3]
        %v326 = vld [vmem:[%s272 + $0xa] sm:$0x3]
        %v327 = vunpack.c.l.u8.bf16 %v321
        %v328 = vunpack.c.l.u8.bf16 %v322
        %v329 = vunpack.c.l.u8.bf16 %v323
        %v330 = vunpack.c.l.u8.bf16 %v324
        %v331 = vunpack.c.l.u8.bf16 %v325
        %v332 = vunpack.c.l.u8.bf16 %v326
        %v333 = vld [vmem:[%s317] sm:$0xf]
        %v334 = vld [vmem:[%s317 + $0x4] sm:$0xf]
        %v337 = vunpack.c.l.b16 %v333
        %v338 = vunpack.c.l.b16 %v334
        %v339 = vpack.c.b16 %v338, %v337
        %v346 = vunpack.c.l.b16 %v327
        %v347 = vunpack.c.l.b16 %v328
        %v348 = vunpack.c.l.b16 %v329
        %v349 = vunpack.c.l.b16 %v330
        %v350 = vunpack.c.l.b16 %v331
        %v351 = vunpack.c.l.b16 %v332
        %v352 = vpack.c.b16 %v347, %v346
        %v353 = vpack.c.b16 %v349, %v348
        %v354 = vpack.c.b16 %v351, %v350
        %vm358 = vcmask 392192
        %v360 = vsel %vm358, %v339, 0
        %362 = vmatprep.subr.bf16.mxu0 0
        %363 = vmatpush1.bf16.msra.mxu0 0
        %364 = vmatprep.subr.bf16.mxu0 0
        %365 = vmatpush1.bf16.msra.mxu0 0
        %366 = vmatprep.subr.bf16.mxu0 0
        %367 = vmatpush1.bf16.msra.mxu0 0
        %368 = vmatprep.subr.bf16.mxu0 0
        %369 = vmatpush1.bf16.msra.mxu0 0
        %370 = vmatprep.subr.bf16.mxu0 0
        %371 = vmatpush1.bf16.msra.mxu0 0
        %372 = vmatprep.subr.bf16.mxu0 0
        %373 = vmatpush1.bf16.msra.mxu0 %v354
        %374 = vmatprep.subr.bf16.mxu0 0
        %375 = vmatpush1.bf16.msra.mxu0 %v353
        %376 = vmatprep.subr.bf16.mxu0 0
        %377 = vmatpush1.bf16.msra.mxu0 %v352
        %378 = vmatprep.subr.bf16.mxu0 0
        %379 = vmatpush2.bf16.msra.mxu0 0
        %380 = vmatprep.subr.bf16.mxu0 0
        %381 = vmatpush2.bf16.msra.mxu0 0
        %382 = vmatprep.subr.bf16.mxu0 0
        %383 = vmatpush2.bf16.msra.mxu0 0
        %384 = vmatprep.subr.bf16.mxu0 0
        %385 = vmatpush2.bf16.msra.mxu0 0
        %386 = vmatprep.subr.bf16.mxu0 0
        %387 = vmatpush2.bf16.msra.mxu0 0
        %388 = vmatprep.subr.bf16.mxu0 0
        %389 = vmatpush2.bf16.msra.mxu0 0
        %390 = vmatprep.subr.bf16.mxu0 0
        %391 = vmatpush2.bf16.msra.mxu0 0
        %392 = vmatprep.subr.bf16.mxu0 0
        %393 = vmatpush2.bf16.msra.mxu0 0
        %394 = vmatprep.mubr.bf16.mxu0 0
        %395 = vmatmul.mubr.bf16.gmra.mxu0 %v360
        %v396 = vpop.f32.mrf.mxu0
        %v397 = vadd.f32 0.0, %v396
        %v398 = vpop.f32.mrf.mxu0
        %v399 = vpop.f32.mrf.mxu0
        %v400 = vadd.f32 0.0, %v399
        %v401 = vpop.f32.mrf.mxu0
        %402 = vdwg.mxu0
        %v403 = vpack.c.bf16 %v400, %v397
        %v404 = vld [vmem:[%s2] sm:$0xf]
        %v405 = vld [vmem:[%s2 + $0x4] sm:$0xf]
        %v406 = vld [vmem:[%s2 + $0x8] sm:$0xf]
        %v407 = vld [vmem:[%s2 + $0xc] sm:$0xf]
        %v408 = vld [vmem:[%s2 + $0x10] sm:$0xf]
        %v409 = vld [vmem:[%s2 + $0x14] sm:$0xf]
        %v410 = vld [vmem:[%s2 + $0x18] sm:$0xf]
        %v418 = vunpack.c.l.b16 %v404
        %v419 = vunpack.c.l.b16 %v405
        %v420 = vunpack.c.l.b16 %v406
        %v421 = vunpack.c.l.b16 %v407
        %v422 = vunpack.c.l.b16 %v408
        %v423 = vunpack.c.l.b16 %v409
        %v424 = vunpack.c.l.b16 %v410
        %v425 = vpack.c.b16 %v419, %v418
        %v426 = vpack.c.b16 %v421, %v420
        %v427 = vpack.c.b16 %v423, %v422
        %v428 = vpack.c.b16 %v424, %v424
        %vm432 = vcmask 457728
        %v434 = vsel %vm432, %v403, 0
        %vm436 = vcmask 1043456
        %v438 = vsel %vm436, %v428, 0
        %440 = vmatprep.subr.bf16.mxu0 0
        %441 = vmatpush1.bf16.msra.mxu0 0
        %442 = vmatprep.subr.bf16.mxu0 0
        %443 = vmatpush1.bf16.msra.mxu0 0
        %444 = vmatprep.subr.bf16.mxu0 0
        %445 = vmatpush1.bf16.msra.mxu0 0
        %446 = vmatprep.subr.bf16.mxu0 0
        %447 = vmatpush1.bf16.msra.mxu0 0
        %448 = vmatprep.subr.bf16.mxu0 0
        %449 = vmatpush1.bf16.msra.mxu0 %v438
        %450 = vmatprep.subr.bf16.mxu0 0
        %451 = vmatpush1.bf16.msra.mxu0 %v427
        %452 = vmatprep.subr.bf16.mxu0 0
        %453 = vmatpush1.bf16.msra.mxu0 %v426
        %454 = vmatprep.subr.bf16.mxu0 0
        %455 = vmatpush1.bf16.msra.mxu0 %v425
        %456 = vmatprep.subr.bf16.mxu0 0
        %457 = vmatpush2.bf16.msra.mxu0 0
        %458 = vmatprep.subr.bf16.mxu0 0
        %459 = vmatpush2.bf16.msra.mxu0 0
        %460 = vmatprep.subr.bf16.mxu0 0
        %461 = vmatpush2.bf16.msra.mxu0 0
        %462 = vmatprep.subr.bf16.mxu0 0
        %463 = vmatpush2.bf16.msra.mxu0 0
        %464 = vmatprep.subr.bf16.mxu0 0
        %465 = vmatpush2.bf16.msra.mxu0 0
        %466 = vmatprep.subr.bf16.mxu0 0
        %467 = vmatpush2.bf16.msra.mxu0 0
        %468 = vmatprep.subr.bf16.mxu0 0
        %469 = vmatpush2.bf16.msra.mxu0 0
        %470 = vmatprep.subr.bf16.mxu0 0
        %471 = vmatpush2.bf16.msra.mxu0 0
        %472 = vmatprep.mubr.bf16.mxu0 0
        %473 = vmatmul.mubr.bf16.gmra.mxu0 %v434
        %v474 = vpop.f32.mrf.mxu0
        %v475 = vadd.f32 0.0, %v474
        %v476 = vpop.f32.mrf.mxu0
        %v477 = vpop.f32.mrf.mxu0
        %v478 = vadd.f32 0.0, %v477
        %v479 = vpop.f32.mrf.mxu0
        %480 = vdwg.mxu0
        %s481 = sld [smem:[#allocation6 + %s30]]
        %v482 = vstv %s481
        %v483 = vmul.f32 %v475, %v482
        %v484 = vmul.f32 %v478, %v482
        %s485 = sld [smem:[#allocation7 + %s30]]
        %v486 = vstv %s485
        %v487 = vadd.f32 %v483, %v486
        %v488 = vadd.f32 %v484, %v486
        %vm489 = vcmask 261120
        %490 = vst.msk [vmem:[%s312] sm:$0xff] %vm489, %v487
        %491 = vst.msk [vmem:[%s312 + $0x8] sm:$0xff] %vm489, %v488
        %s492 = sand.u32 %s172, 1
        %s493 = scalar_lea.sflag [#allocation4], %s492
        %s494 = sand.u32 %s172, 1
        %s495 = smul.addr %s494, 16
        %s496 = scalar_lea.vmem [#allocation9], %s495
        // Predicated region
        $region53: #{pipeline.1} parent=39 // pred_check
          %p497 = pneg %p182
        $region54: #{pipeline.1} parent=39 // pred_check_branch
          %499 = sbr.rel (%p497) target = $region56
        $region55: #{pipeline.1} parent=39 // pred_region
          %s500 = smul.u32 2, %s31
          %s502 = ssub.s32 256, 256
          %503 = vsyncadd %s493, %s502
          %s504 = smul.addr %s30, 4
          %s505 = sadd.s32 %s500, %s504
          %s506 = smul.addr %s29, 12
          %s507 = sadd.s32 %s505, %s506
          %s508 = smul.addr %s507, 128
          %s509 = scalar_lea.hbm %s5, %s508
          %s510 = sshll.u32 %s496, 4
          %s511 = int_to_ptr.vmem [resolvable:$true] %s510
          %516 = dma.vmem_to_hbm [thread:$0]  %s511, 256, %s509, %s493, 128, 128, 8
        $region56: #{pipeline.1} parent=39 // pred_fallthru
          _
      $region40: #{pipeline.1} parent=5 // pred_fallthru
        _
      %p517 = scmp.le.s32.totalorder 2, %s19
      // Predicated region
      $region57: #{pipeline.1} parent=5 // pred_check
        %p518 = pneg %p517
      $region58: #{pipeline.1} parent=5 // pred_check_branch
        %520 = sbr.rel (%p518) target = $region60
      $region59: #{pipeline.1} parent=5 // pred_region
        %s521 = ssub.s32 %s19, 2
        // Predicated region
        $region61: #{pipeline.1} parent=59 // pred_check
          %p522 = pneg %p188
        $region62: #{pipeline.1} parent=59 // pred_check_branch
          %524 = sbr.rel (%p522) target = $region64
        $region63: #{pipeline.1} parent=59 // pred_region
          %s525 = sand.u32 %s173, 1
          %s526 = scalar_lea.sflag [#allocation4], %s525
          %s527 = sand.u32 %s173, 1
          %s528 = smul.addr %s527, 16
          %s529 = scalar_lea.vmem [#allocation9], %s528
          %530 = dma.done %s526, 256
        $region64: #{pipeline.1} parent=59 // pred_fallthru
          _
      $region60: #{pipeline.1} parent=5 // pred_fallthru
        _
    $region6: #{pipeline.1} parent=1 // loop_footer
      %s23 = sadd.s32 1, %s19
    $region7: #{pipeline.1} parent=1 // loop_footer_branch
      %18 = sbr.rel target = $region3
    $region8: #{pipeline.1} parent=1 // loop_exit
      _
    %531 = vsyncpa [#allocation3], 1
    %s532 = scalar_lea.sflag [#allocation3], 1
    %533 = vsyncpa %s532, 1
    %534 = vsyncpa [#allocation4], 1
    %s535 = scalar_lea.sflag [#allocation4], 1
    %536 = vsyncpa %s535, 1
    %537 = vsyncpa [#allocation5], 1
    %s538 = scalar_lea.sflag [#allocation5], 1
    %539 = vsyncpa %s538, 1
    %540 = vsyncpa [#allocation8], 1

// kernel: pipeline.1
$region0: #{pipeline.1}
  #allocation0 [shape = 'u32[]', space=smem, size = 0x4, offset = 0x4, fixed_abs, tag = 'smem constant byte address 0x4 - core index']
  #allocation1 [shape = 'u32[144,128]{1,0:T(1,128)}', space=vmem, size = 0x12000, scoped, tag = 'internal scratch']
  %s0 = inlined_call_operand.hbm [shape: u8[2,3,48,56], index: 0, kind: input, shape index: {}]
  %s1 = inlined_call_operand.vmem [shape: bf16[32,48], index: 1, kind: input, shape index: {}]
  %s2 = inlined_call_operand.vmem [shape: bf16[56,32], index: 2, kind: input, shape index: {}]
  %s3 = inlined_call_operand.vmem [shape: f32[3], index: 3, kind: input, shape index: {}]
  %s4 = inlined_call_operand.vmem [shape: f32[3], index: 4, kind: input, shape index: {}]
  %s5 = inlined_call_operand.hbm [shape: f32[2,3,32,32], index: 5, kind: output, shape index: {}]
  %s6 = sld [smem:[#allocation0]]
  $region65: #{pipeline.1} parent=0
    _
  %s8 = ssub.s32 1, %s6
  %s9 = scalar_select 0, %s8, %s6
  $region1: #{pipeline.1} parent=0
    #allocation2 [shape = 'u8[12288]{0}', space=vmem, size = 0x3000, scoped, tag = 'input window, operand 0']
    #allocation3 [shape = 's32[2]{0}', space=sflag, size = 0x8, scoped, tag = 'scoped memory for pipeline.1']
    #allocation4 [shape = 's32[2]{0}', space=sflag, size = 0x8, scoped, tag = 'scoped memory for pipeline.1']
    #allocation5 [shape = 's32[2]{0}', space=sflag, size = 0x8, scoped, tag = 'scoped memory for pipeline.1']
    #allocation6 [shape = 'u8[512]{0}', space=smem, size = 0x200, scoped, tag = 'input window, operand 3, single buffered']
    #allocation7 [shape = 'u8[512]{0}', space=smem, size = 0x200, scoped, tag = 'input window, operand 4, single buffered']
    #allocation8 [shape = 's32[1]{0}', space=sflag, size = 0x4, scoped, tag = 'scoped memory for pipeline.1']
    #allocation9 [shape = 'u8[16384]{0}', space=vmem, size = 0x4000, scoped, tag = 'output window, operand 0']
    %10 = vsyncpa [#allocation3], 0
    %s11 = scalar_lea.sflag [#allocation3], 1
    %12 = vsyncpa %s11, 0
    %13 = vsyncpa [#allocation5], 0
    %14 = vsyncpa [#allocation8], 0
    %15 = vsyncpa [#allocation4], 0
    %s16 = scalar_lea.sflag [#allocation4], 1
    %17 = vsyncpa %s16, 0
    loop: start=0, step=1, limit=14
    $region2: #{pipeline.1} parent=1 // loop_pre_header
      _
    $region3: #{pipeline.1} parent=1 // loop_header
      %s19 = sphi 0, %s23
      %p20 = scmp.ge.s32.totalorder %s19, 14
      %s26 = sphi 0, %s45
      %s27 = sphi 0, %s41
      %s28 = sphi 0, %s37
      %s29 = sphi 0, %s26
      %s30 = sphi 0, %s27
      %s31 = sphi 0, %s28
      %s32 = sphi 0, %s29
      %s33 = sphi 0, %s30
      %s34 = sphi 0, %s31
      %s50 = sphi 0, %s52
      %s53 = sphi 0, %s50
      %s54 = sphi 0, %s53
      %s70 = sphi 0, %s54
      %s76 = sphi 0, %s78
      %s79 = sphi 0, %s76
      %s80 = sphi 0, %s79
      %s96 = sphi 0, %s80
      %s100 = sphi 0, %s100
      %s102 = sphi 0, %s100
      %s103 = sphi 0, %s102
      %s117 = sphi 0, %s103
      %s121 = sphi 0, %s121
      %s123 = sphi 0, %s121
      %s124 = sphi 0, %s123
      %s138 = sphi 0, %s124
      %s142 = sphi 0, %s142
      %s144 = sphi 0, %s142
      %s145 = sphi 0, %s144
      %s159 = sphi 0, %s145
      %s169 = sphi 0, %s171
      %s172 = sphi 0, %s169
      %s173 = sphi 0, %s172
      %s189 = sphi 0, %s173
    $region4: #{pipeline.1} parent=1 // loop_header_branch
      %22 = sbr.rel (%p20) target = $region8
    $region5: #{pipeline.1} parent=1 // loop_body
      %s24 = ssub.s32 %s19, 1
      %s25 = ssub.s32 %s19, 2
      %s35 = sadd.s32 1, %s28
      %p36 = scmp.ge.s32.totalorder %s35, 2
      %s37 = scalar_select %p36, 0, %s35
      %s38 = sadd.s32 1, %s27
      %s39 = scalar_select %p36, %s38, %s27
      %p40 = scmp.ge.s32.totalorder %s39, 3
      %s41 = scalar_select %p40, 0, %s39
      %s42 = sadd.s32 1, %s26
      %s43 = scalar_select %p40, %s42, %s26
      %p44 = scmp.ge.s32.totalorder %s43, 2
      %s45 = scalar_select %p44, 0, %s43
      %s46 = ssub.s32 %s26, %s45
      %s47 = ssub.s32 %s27, %s41
      %s48 = sor.u32 %s46, %s47
      %p49 = scmp.eq.s32.totalorder %s48, 0
      %s51 = sadd.s32 %s50, 1
      %s52 = scalar_select %p49, %s50, %s51
      %p55 = pneg %p49
      %p56 = scmp.eq.s32.totalorder %s19, 11
      %p57 = por %p55, %p56
      %p58 = scmp.ne.s32.totalorder %s50, %s53
      %p59 = scmp.eq.s32.totalorder %s19, 0
      %p60 = por %p58, %p59
      %p61 = scmp.ne.s32.totalorder %s50, %s53
      %p62 = scmp.eq.s32.totalorder %s24, 11
      %p63 = por %p61, %p62
      %p64 = scmp.ne.s32.totalorder %s53, %s54
      %p65 = scmp.eq.s32.totalorder %s24, 0
      %p66 = por %p64, %p65
      %p67 = scmp.ne.s32.totalorder %s53, %s54
      %p68 = scmp.eq.s32.totalorder %s25, 11
      %p69 = por %p67, %p68
      %p71 = scmp.ne.s32.totalorder %s54, %s70
      %p72 = scmp.eq.s32.totalorder %s25, 0
      %p73 = por %p71, %p72
      %s74 = ssub.s32 %s28, %s37
      %p75 = scmp.eq.s32.totalorder %s74, 0
      %s77 = sadd.s32 %s76, 1
      %s78 = scalar_select %p75, %s76, %s77
      %p81 = pneg %p75
      %p82 = scmp.eq.s32.totalorder %s19, 11
      %p83 = por %p81, %p82
      %p84 = scmp.ne.s32.totalorder %s76, %s79
      %p85 = scmp.eq.s32.totalorder %s19, 0
      %p86 = por %p84, %p85
      %p87 = scmp.ne.s32.totalorder %s76, %s79
      %p88 = scmp.eq.s32.totalorder %s24, 11
      %p89 = por %p87, %p88
      %p90 = scmp.ne.s32.totalorder %s79, %s80
      %p91 = scmp.eq.s32.totalorder %s24, 0
      %p92 = por %p90, %p91
      %p93 = scmp.ne.s32.totalorder %s79, %s80
      %p94 = scmp.eq.s32.totalorder %s25, 11
      %p95 = por %p93, %p94
      %p97 = scmp.ne.s32.totalorder %s80, %s96
      %p98 = scmp.eq.s32.totalorder %s25, 0
      %p99 = por %p97, %p98
      %s101 = sadd.s32 %s100, 1
      %p104 = scmp.eq.s32.totalorder %s19, 11
      %p105 = scmp.ne.s32.totalorder %s100, %s102
      %p106 = scmp.eq.s32.totalorder %s19, 0
      %p107 = por %p105, %p106
      %p108 = scmp.ne.s32.totalorder %s100, %s102
      %p109 = scmp.eq.s32.totalorder %s24, 11
      %p110 = por %p108, %p109
      %p111 = scmp.ne.s32.totalorder %s102, %s103
      %p112 = scmp.eq.s32.totalorder %s24, 0
      %p113 = por %p111, %p112
      %p114 = scmp.ne.s32.totalorder %s102, %s103
      %p115 = scmp.eq.s32.totalorder %s25, 11
      %p116 = por %p114, %p115
      %p118 = scmp.ne.s32.totalorder %s103, %s117
      %p119 = scmp.eq.s32.totalorder %s25, 0
      %p120 = por %p118, %p119
      %s122 = sadd.s32 %s121, 1
      %p125 = scmp.eq.s32.totalorder %s19, 11
      %p126 = scmp.ne.s32.totalorder %s121, %s123
      %p127 = scmp.eq.s32.totalorder %s19, 0
      %p128 = por %p126, %p127
      %p129 = scmp.ne.s32.totalorder %s121, %s123
      %p130 = scmp.eq.s32.totalorder %s24, 11
      %p131 = por %p129, %p130
      %p132 = scmp.ne.s32.totalorder %s123, %s124
      %p133 = scmp.eq.s32.totalorder %s24, 0
      %p134 = por %p132, %p133
      %p135 = scmp.ne.s32.totalorder %s123, %s124
      %p136 = scmp.eq.s32.totalorder %s25, 11
      %p137 = por %p135, %p136
      %p139 = scmp.ne.s32.totalorder %s124, %s138
      %p140 = scmp.eq.s32.totalorder %s25, 0
      %p141 = por %p139, %p140
      %s143 = sadd.s32 %s142, 1
      %p146 = scmp.eq.s32.totalorder %s19, 11
      %p147 = scmp.ne.s32.totalorder %s142, %s144
      %p148 = scmp.eq.s32.totalorder %s19, 0
      %p149 = por %p147, %p148
      %p150 = scmp.ne.s32.totalorder %s142, %s144
      %p151 = scmp.eq.s32.totalorder %s24, 11
      %p152 = por %p150, %p151
      %p153 = scmp.ne.s32.totalorder %s144, %s145
      %p154 = scmp.eq.s32.totalorder %s24, 0
      %p155 = por %p153, %p154
      %p156 = scmp.ne.s32.totalorder %s144, %s145
      %p157 = scmp.eq.s32.totalorder %s25, 11
      %p158 = por %p156, %p157
      %p160 = scmp.ne.s32.totalorder %s145, %s159
      %p161 = scmp.eq.s32.totalorder %s25, 0
      %p162 = por %p160, %p161
      %s163 = ssub.s32 %s26, %s45
      %s164 = ssub.s32 %s27, %s41
      %s165 = sor.u32 %s163, %s164
      %s166 = ssub.s32 %s28, %s37
      %s167 = sor.u32 %s165, %s166
      %p168 = scmp.eq.s32.totalorder %s167, 0
      %s170 = sadd.s32 %s169, 1
      %s171 = scalar_select %p168, %s169, %s170
      %p174 = pneg %p168
      %p175 = scmp.eq.s32.totalorder %s19, 11
      %p176 = por %p174, %p175
      %p177 = scmp.ne.s32.totalorder %s169, %s172
      %p178 = scmp.eq.s32.totalorder %s19, 0
      %p179 = por %p177, %p178
      %p180 = scmp.ne.s32.totalorder %s169, %s172
      %p181 = scmp.eq.s32.totalorder %s24, 11
      %p182 = por %p180, %p181
      %p183 = scmp.ne.s32.totalorder %s172, %s173
      %p184 = scmp.eq.s32.totalorder %s24, 0
      %p185 = por %p183, %p184
      %p186 = scmp.ne.s32.totalorder %s172, %s173
      %p187 = scmp.eq.s32.totalorder %s25, 11
      %p188 = por %p186, %p187
      %p190 = scmp.ne.s32.totalorder %s173, %s189
      %p191 = scmp.eq.s32.totalorder %s25, 0
      %p192 = por %p190, %p191
      %p193 = scmp.le.s32.totalorder 1, %s19
      %p194 = scmp.lt.s32.totalorder %s19, 13
      %p195 = pnand %p193, %p194
      %p196 = pneg %p195
      // Predicated region
      $region9: #{pipeline.1} parent=5 // pred_check
        _
      $region10: #{pipeline.1} parent=5 // pred_check_branch
        %198 = sbr.rel (%p195) target = $region12
      $region11: #{pipeline.1} parent=5 // pred_region
        %s199 = ssub.s32 %s19, 1
        // Predicated region
        $region13: #{pipeline.1} parent=11 // pred_check
          %p200 = pneg %p113
        $region14: #{pipeline.1} parent=11 // pred_check_branch
          %202 = sbr.rel (%p200) target = $region16
        $region15: #{pipeline.1} parent=11 // pred_region
          _
        $region16: #{pipeline.1} parent=11 // pred_fallthru
          _
        // Predicated region
        $region17: #{pipeline.1} parent=11 // pred_check
          %p203 = pneg %p134
        $region18: #{pipeline.1} parent=11 // pred_check_branch
          %205 = sbr.rel (%p203) target = $region20
        $region19: #{pipeline.1} parent=11 // pred_region
          %s207 = ssub.s32 16, 16
          %208 = vsyncadd [#allocation5], %s207
          %s210 = sshll.u32 %s3, 4
          %s211 = int_to_ptr.vmem [resolvable:$true] %s210
          %213 = dma.vmem_to_smem %s211, 16, [#allocation6], [#allocation5]
        $region20: #{pipeline.1} parent=11 // pred_fallthru
          _
        // Predicated region
        $region21: #{pipeline.1} parent=11 // pred_check
          %p214 = pneg %p155
        $region22: #{pipeline.1} parent=11 // pred_check_branch
          %216 = sbr.rel (%p214) target = $region24
        $region23: #{pipeline.1} parent=11 // pred_region
          %s218 = ssub.s32 16, 16
          %219 = vsyncadd [#allocation8], %s218
          %s221 = sshll.u32 %s4, 4
          %s222 = int_to_ptr.vmem [resolvable:$true] %s221
          %224 = dma.vmem_to_smem %s222, 16, [#allocation7], [#allocation8]
        $region24: #{pipeline.1} parent=11 // pred_fallthru
          _
      $region12: #{pipeline.1} parent=5 // pred_fallthru
        _
      %p225 = scmp.lt.s32.totalorder %s19, 12
      // Predicated region
      $region25: #{pipeline.1} parent=5 // pred_check
        %p226 = pneg %p225
      $region26: #{pipeline.1} parent=5 // pred_check_branch
        %228 = sbr.rel (%p226) target = $region28
      $region27: #{pipeline.1} parent=5 // pred_region
        // Predicated region
        $region29: #{pipeline.1} parent=27 // pred_check
          %p229 = pneg %p60
        $region30: #{pipeline.1} parent=27 // pred_check_branch
          %231 = sbr.rel (%p229) target = $region32
        $region31: #{pipeline.1} parent=27 // pred_region
          %s232 = sand.u32 %s50, 1
          %s233 = scalar_lea.sflag [#allocation3], %s232
          %s234 = sand.u32 %s50, 1
          %s235 = smul.addr %s234, 12
          %s236 = scalar_lea.vmem [#allocation2], %s235
          %s238 = ssub.s32 192, 192
          %239 = vsyncadd %s233, %s238
          %s240 = smul.addr %s27, 6
          %s241 = smul.addr %s26, 18
          %s242 = sadd.s32 %s240, %s241
          %s243 = smul.addr %s242, 32
          %s244 = scalar_lea.hbm %s0, %s243
          %s245 = sshll.u32 %s236, 4
          %s246 = int_to_ptr.vmem [resolvable:$true] %s245
          %251 = dma.hbm_to_vmem [thread:$0]  %s244, 192, %s246, %s233, 32, 32, 2
        $region32: #{pipeline.1} parent=27 // pred_fallthru
          _
        // Predicated region
        $region33: #{pipeline.1} parent=27 // pred_check
          %p252 = pneg %p86
        $region34: #{pipeline.1} parent=27 // pred_check_branch
          %254 = sbr.rel (%p252) target = $region36
        $region35: #{pipeline.1} parent=27 // pred_region
          %s255 = smul.u32 2, %s28
          %p256 = scmp.lt.s32.totalorder %s255, 3
          %s257 = scalar_select %p256, %s255, 3
          %s258 = smul.addr %s257, 4
          %s259 = scalar_lea.vmem %s1, %s258
          %s260 = smul.u32 2, %s28
        $region36: #{pipeline.1} parent=27 // pred_fallthru
          _
      $region28: #{pipeline.1} parent=5 // pred_fallthru
        _
      %p261 = scmp.le.s32.totalorder 1, %s19
      %p262 = scmp.lt.s32.totalorder %s19, 13
      %p263 = pnand %p261, %p262
      %p264 = pneg %p263
      // Predicated region
      $region37: #{pipeline.1} parent=5 // pred_check
        _
      $region38: #{pipeline.1} parent=5 // pred_check_branch
        %266 = sbr.rel (%p263) target = $region40
      $region39: #{pipeline.1} parent=5 // pred_region
        %s267 = ssub.s32 %s19, 1
        %s268 = sand.u32 %s53, 1
        %s269 = scalar_lea.sflag [#allocation3], %s268
        %s270 = sand.u32 %s53, 1
        %s271 = smul.addr %s270, 12
        %s272 = scalar_lea.vmem [#allocation2], %s271
        // Predicated region
        $region41: #{pipeline.1} parent=39 // pred_check
          %p273 = pneg %p66
        $region42: #{pipeline.1} parent=39 // pred_check_branch
          %275 = sbr.rel (%p273) target = $region44
        $region43: #{pipeline.1} parent=39 // pred_region
          %276 = dma.done %s269, 192
        $region44: #{pipeline.1} parent=39 // pred_fallthru
          _
        // Predicated region
        $region45: #{pipeline.1} parent=39 // pred_check
          %p277 = pneg %p134
        $region46: #{pipeline.1} parent=39 // pred_check_branch
          %279 = sbr.rel (%p277) target = $region48
        $region47: #{pipeline.1} parent=39 // pred_region
          %280 = dma.done [#allocation5], 16
        $region48: #{pipeline.1} parent=39 // pred_fallthru
          _
        // Predicated region
        $region49: #{pipeline.1} parent=39 // pred_check
          %p281 = pneg %p155
        $region50: #{pipeline.1} parent=39 // pred_check_branch
          %283 = sbr.rel (%p281) target = $region52
        $region51: #{pipeline.1} parent=39 // pred_region
          %284 = dma.done [#allocation8], 16
        $region52: #{pipeline.1} parent=39 // pred_fallthru
          _
        %285 = sfence
        %s286 = sand.u32 %s53, 1
        %s287 = scalar_lea.sflag [#allocation3], %s286
        %s288 = sand.u32 %s53, 1
        %s289 = smul.addr %s288, 12
        %s290 = scalar_lea.vmem [#allocation2], %s289
        %p291 = pneg %p66
        %p292 = pneg %p63
        %s293 = smul.u32 2, %s31
        %p294 = scmp.lt.s32.totalorder %s293, 3
        %s295 = scalar_select %p294, %s293, 3
        %s296 = smul.addr %s295, 4
        %s297 = scalar_lea.vmem %s1, %s296
        %p298 = pneg %p92
        %p299 = pneg %p89
        %p300 = pneg %p113
        %p301 = pneg %p110
        %p302 = pneg %p134
        %p303 = pneg %p131
        %p304 = pneg %p155
        %p305 = pneg %p152
        %p306 = pneg %p185
        %p307 = pneg %p182
        %s308 = sand.u32 %s172, 1
        %s309 = scalar_lea.sflag [#allocation4], %s308
        %s310 = sand.u32 %s172, 1
        %s311 = smul.addr %s310, 16
        %s312 = scalar_lea.vmem [#allocation9], %s311
        %s313 = smul.u32 2, %s31
        %p314 = scmp.lt.s32.totalorder %s313, 3
        %s315 = scalar_select %p314, %s313, 3
        %s316 = smul.addr %s315, 4
        %s317 = scalar_lea.vmem %s1, %s316
        %s318 = smul.u32 2, %s31
        %s319 = smul.u32 2, %s31
        %v321 = vld [vmem:[%s272] sm:$0x3]
        %v322 = vld [vmem:[%s272 + $0x2] sm:$0x3]
        %v323 = vld [vmem:[%s272 + $0x4] sm:$0x3]
        %v324 = vld [vmem:[%s272 + $0x6] sm:$0x3]
        %v325 = vld [vmem:[%s272 + $0x8] sm:$0x3]
        %v326 = vld [vmem:[%s272 + $0xa] sm:$0x3]
        %v327 = vunpack.c.l.u8.bf16 %v321
        %v328 = vunpack.c.l.u8.bf16 %v322
        %v329 = vunpack.c.l.u8.bf16 %v323
        %v330 = vunpack.c.l.u8.bf16 %v324
        %v331 = vunpack.c.l.u8.bf16 %v325
        %v332 = vunpack.c.l.u8.bf16 %v326
        %v333 = vld [vmem:[%s317] sm:$0xf]
        %v334 = vld [vmem:[%s317 + $0x4] sm:$0xf]
        %v337 = vunpack.c.l.b16 %v333
        %v338 = vunpack.c.l.b16 %v334
        %v339 = vpack.c.b16 %v338, %v337
        %v346 = vunpack.c.l.b16 %v327
        %v347 = vunpack.c.l.b16 %v328
        %v348 = vunpack.c.l.b16 %v329
        %v349 = vunpack.c.l.b16 %v330
        %v350 = vunpack.c.l.b16 %v331
        %v351 = vunpack.c.l.b16 %v332
        %v352 = vpack.c.b16 %v347, %v346
        %v353 = vpack.c.b16 %v349, %v348
        %v354 = vpack.c.b16 %v351, %v350
        %vm358 = vcmask 392192
        %v360 = vsel %vm358, %v339, 0
        %362 = vmatprep.subr.bf16.mxu0 0
        %363 = vmatpush1.bf16.msra.mxu0 0
        %364 = vmatprep.subr.bf16.mxu0 0
        %365 = vmatpush1.bf16.msra.mxu0 0
        %366 = vmatprep.subr.bf16.mxu0 0
        %367 = vmatpush1.bf16.msra.mxu0 0
        %368 = vmatprep.subr.bf16.mxu0 0
        %369 = vmatpush1.bf16.msra.mxu0 0
        %370 = vmatprep.subr.bf16.mxu0 0
        %371 = vmatpush1.bf16.msra.mxu0 0
        %372 = vmatprep.subr.bf16.mxu0 0
        %373 = vmatpush1.bf16.msra.mxu0 %v354
        %374 = vmatprep.subr.bf16.mxu0 0
        %375 = vmatpush1.bf16.msra.mxu0 %v353
        %376 = vmatprep.subr.bf16.mxu0 0
        %377 = vmatpush1.bf16.msra.mxu0 %v352
        %378 = vmatprep.subr.bf16.mxu0 0
        %379 = vmatpush2.bf16.msra.mxu0 0
        %380 = vmatprep.subr.bf16.mxu0 0
        %381 = vmatpush2.bf16.msra.mxu0 0
        %382 = vmatprep.subr.bf16.mxu0 0
        %383 = vmatpush2.bf16.msra.mxu0 0
        %384 = vmatprep.subr.bf16.mxu0 0
        %385 = vmatpush2.bf16.msra.mxu0 0
        %386 = vmatprep.subr.bf16.mxu0 0
        %387 = vmatpush2.bf16.msra.mxu0 0
        %388 = vmatprep.subr.bf16.mxu0 0
        %389 = vmatpush2.bf16.msra.mxu0 0
        %390 = vmatprep.subr.bf16.mxu0 0
        %391 = vmatpush2.bf16.msra.mxu0 0
        %392 = vmatprep.subr.bf16.mxu0 0
        %393 = vmatpush2.bf16.msra.mxu0 0
        %394 = vmatprep.mubr.bf16.mxu0 0
        %395 = vmatmul.mubr.bf16.gmra.mxu0 %v360
        %v396 = vpop.f32.mrf.mxu0
        %v397 = vadd.f32 0.0, %v396
        %v398 = vpop.f32.mrf.mxu0
        %v399 = vpop.f32.mrf.mxu0
        %v400 = vadd.f32 0.0, %v399
        %v401 = vpop.f32.mrf.mxu0
        %402 = vdwg.mxu0
        %v403 = vpack.c.bf16 %v400, %v397
        %v404 = vld [vmem:[%s2] sm:$0xf]
        %v405 = vld [vmem:[%s2 + $0x4] sm:$0xf]
        %v406 = vld [vmem:[%s2 + $0x8] sm:$0xf]
        %v407 = vld [vmem:[%s2 + $0xc] sm:$0xf]
        %v408 = vld [vmem:[%s2 + $0x10] sm:$0xf]
        %v409 = vld [vmem:[%s2 + $0x14] sm:$0xf]
        %v410 = vld [vmem:[%s2 + $0x18] sm:$0xf]
        %v418 = vunpack.c.l.b16 %v404
        %v419 = vunpack.c.l.b16 %v405
        %v420 = vunpack.c.l.b16 %v406
        %v421 = vunpack.c.l.b16 %v407
        %v422 = vunpack.c.l.b16 %v408
        %v423 = vunpack.c.l.b16 %v409
        %v424 = vunpack.c.l.b16 %v410
        %v425 = vpack.c.b16 %v419, %v418
        %v426 = vpack.c.b16 %v421, %v420
        %v427 = vpack.c.b16 %v423, %v422
        %v428 = vpack.c.b16 %v424, %v424
        %vm432 = vcmask 457728
        %v434 = vsel %vm432, %v403, 0
        %vm436 = vcmask 1043456
        %v438 = vsel %vm436, %v428, 0
        %440 = vmatprep.subr.bf16.mxu0 0
        %441 = vmatpush1.bf16.msra.mxu0 0
        %442 = vmatprep.subr.bf16.mxu0 0
        %443 = vmatpush1.bf16.msra.mxu0 0
        %444 = vmatprep.subr.bf16.mxu0 0
        %445 = vmatpush1.bf16.msra.mxu0 0
        %446 = vmatprep.subr.bf16.mxu0 0
        %447 = vmatpush1.bf16.msra.mxu0 0
        %448 = vmatprep.subr.bf16.mxu0 0
        %449 = vmatpush1.bf16.msra.mxu0 %v438
        %450 = vmatprep.subr.bf16.mxu0 0
        %451 = vmatpush1.bf16.msra.mxu0 %v427
        %452 = vmatprep.subr.bf16.mxu0 0
        %453 = vmatpush1.bf16.msra.mxu0 %v426
        %454 = vmatprep.subr.bf16.mxu0 0
        %455 = vmatpush1.bf16.msra.mxu0 %v425
        %456 = vmatprep.subr.bf16.mxu0 0
        %457 = vmatpush2.bf16.msra.mxu0 0
        %458 = vmatprep.subr.bf16.mxu0 0
        %459 = vmatpush2.bf16.msra.mxu0 0
        %460 = vmatprep.subr.bf16.mxu0 0
        %461 = vmatpush2.bf16.msra.mxu0 0
        %462 = vmatprep.subr.bf16.mxu0 0
        %463 = vmatpush2.bf16.msra.mxu0 0
        %464 = vmatprep.subr.bf16.mxu0 0
        %465 = vmatpush2.bf16.msra.mxu0 0
        %466 = vmatprep.subr.bf16.mxu0 0
        %467 = vmatpush2.bf16.msra.mxu0 0
        %468 = vmatprep.subr.bf16.mxu0 0
        %469 = vmatpush2.bf16.msra.mxu0 0
        %470 = vmatprep.subr.bf16.mxu0 0
        %471 = vmatpush2.bf16.msra.mxu0 0
        %472 = vmatprep.mubr.bf16.mxu0 0
        %473 = vmatmul.mubr.bf16.gmra.mxu0 %v434
        %v474 = vpop.f32.mrf.mxu0
        %v475 = vadd.f32 0.0, %v474
        %v476 = vpop.f32.mrf.mxu0
        %v477 = vpop.f32.mrf.mxu0
        %v478 = vadd.f32 0.0, %v477
        %v479 = vpop.f32.mrf.mxu0
        %480 = vdwg.mxu0
        %s481 = sld [smem:[#allocation6 + %s30]]
        %v482 = vstv %s481
        %v483 = vmul.f32 %v475, %v482
        %v484 = vmul.f32 %v478, %v482
        %s485 = sld [smem:[#allocation7 + %s30]]
        %v486 = vstv %s485
        %v487 = vadd.f32 %v483, %v486
        %v488 = vadd.f32 %v484, %v486
        %vm489 = vcmask 261120
        %490 = vst.msk [vmem:[%s312] sm:$0xff] %vm489, %v487
        %491 = vst.msk [vmem:[%s312 + $0x8] sm:$0xff] %vm489, %v488
        %s492 = sand.u32 %s172, 1
        %s493 = scalar_lea.sflag [#allocation4], %s492
        %s494 = sand.u32 %s172, 1
        %s495 = smul.addr %s494, 16
        %s496 = scalar_lea.vmem [#allocation9], %s495
        // Predicated region
        $region53: #{pipeline.1} parent=39 // pred_check
          %p497 = pneg %p182
        $region54: #{pipeline.1} parent=39 // pred_check_branch
          %499 = sbr.rel (%p497) target = $region56
        $region55: #{pipeline.1} parent=39 // pred_region
          %s500 = smul.u32 2, %s31
          %s502 = ssub.s32 256, 256
          %503 = vsyncadd %s493, %s502
          %s504 = smul.addr %s30, 4
          %s505 = sadd.s32 %s500, %s504
          %s506 = smul.addr %s29, 12
          %s507 = sadd.s32 %s505, %s506
          %s508 = smul.addr %s507, 128
          %s509 = scalar_lea.hbm %s5, %s508
          %s510 = sshll.u32 %s496, 4
          %s511 = int_to_ptr.vmem [resolvable:$true] %s510
          %516 = dma.vmem_to_hbm [thread:$0]  %s511, 256, %s509, %s493, 128, 128, 8
        $region56: #{pipeline.1} parent=39 // pred_fallthru
          _
      $region40: #{pipeline.1} parent=5 // pred_fallthru
        _
      %p517 = scmp.le.s32.totalorder 2, %s19
      // Predicated region
      $region57: #{pipeline.1} parent=5 // pred_check
        %p518 = pneg %p517
      $region58: #{pipeline.1} parent=5 // pred_check_branch
        %520 = sbr.rel (%p518) target = $region60
      $region59: #{pipeline.1} parent=5 // pred_region
        %s521 = ssub.s32 %s19, 2
        // Predicated region
        $region61: #{pipeline.1} parent=59 // pred_check
          %p522 = pneg %p188
        $region62: #{pipeline.1} parent=59 // pred_check_branch
          %524 = sbr.rel (%p522) target = $region64
        $region63: #{pipeline.1} parent=59 // pred_region
          %s525 = sand.u32 %s173, 1
          %s526 = scalar_lea.sflag [#allocation4], %s525
          %s527 = sand.u32 %s173, 1
          %s528 = smul.addr %s527, 16
          %s529 = scalar_lea.vmem [#allocation9], %s528
          %530 = dma.done %s526, 256
        $region64: #{pipeline.1} parent=59 // pred_fallthru
          _
      $region60: #{pipeline.1} parent=5 // pred_fallthru
        _
    $region6: #{pipeline.1} parent=1 // loop_footer
      %s23 = sadd.s32 1, %s19
    $region7: #{pipeline.1} parent=1 // loop_footer_branch
      %18 = sbr.rel target = $region3
    $region8: #{pipeline.1} parent=1 // loop_exit
      _
    %531 = vsyncpa [#allocation3], 1
    %s532 = scalar_lea.sflag [#allocation3], 1
    %533 = vsyncpa %s532, 1
    %534 = vsyncpa [#allocation4], 1
    %s535 = scalar_lea.sflag [#allocation4], 1
    %536 = vsyncpa %s535, 1
    %537 = vsyncpa [#allocation5], 1
    %s538 = scalar_lea.sflag [#allocation5], 1
    %539 = vsyncpa %s538, 1
    %540 = vsyncpa [#allocation8], 1

</llo_original>
